<compile_context>
chip_gen: v7x
topology: tpu7x:2x2x1
jax: 0.10.0
libtpu: 0.0.40
codegen_flags: <defaults>
</compile_context>

<pallas_src>
import functools

import jax
import jax.numpy as jnp
from jax.experimental import pallas as pl
from jax.experimental.pallas import tpu as pltpu

L1_SIZE = 256
L2_SIZE = 64
K_TILE_MAX = 1024  # max fc1-contraction tile; bounds per-grid-step VMEM


def _round_up(x, m):
    return ((x + m - 1) // m) * m


def _cdiv(a, b):
    return -(-a // b)


def _ann_kernel(x_ref, w1_ref, b1_ref, w2_ref, b2_ref, w3_ref, b3_ref,
                o_ref, acc_ref, *, compute_dtype):
    """One (batch-tile, K-tile) step of the fused 3-layer MLP.

    Grid: (num_batch_tiles, k_tiles); k (fc1 contraction over input_size) is
    the innermost "arbitrary" axis.

    x_ref  : (tile_b, tk)    input tile, streamed in its HBM dtype, cast here
    w1_ref : (tk, 256)       fc1 weight K-slice (compute_dtype)
    b1_ref : (1, 256) f32    w2_ref: (256, 64)   b2_ref: (1, 64) f32
    w3_ref : (1, 64)         fc3 weight as a row (out=1, in=64)
    b3_ref : (1, 1) f32      SMEM scalar
    o_ref  : (1, tile_b)     lane-dense output row, f32
    acc_ref: (tile_b, 256) f32  fc1 accumulator (persists across k)
    """
    k = pl.program_id(1)

    @pl.when(k == 0)
    def _():
        acc_ref[...] = jnp.zeros_like(acc_ref)

    # fc1 partial contraction (MXU, f32 accumulate). Cast x per-tile so the
    # wrapper never makes an extra HBM pass over x.
    acc_ref[...] += jnp.dot(x_ref[...].astype(compute_dtype), w1_ref[...],
                            preferred_element_type=jnp.float32)

    @pl.when(k == pl.num_programs(1) - 1)
    def _():
        # Epilogue in f32 (bias/ReLU/sigmoid stay f32 even on the bf16 path).
        h1 = jnp.maximum(acc_ref[...] + b1_ref[...], 0.0)
        h2 = jnp.dot(h1.astype(w2_ref.dtype), w2_ref[...],
                     preferred_element_type=jnp.float32)
        h2 = jnp.maximum(h2 + b2_ref[...], 0.0)
        # fc3: contract (1, 64) against (tile_b, 64) over the 64-axis (NT
        # matmul, q@k^T-style) -> lane-dense (1, tile_b) row; avoids an N=1
        # matmul and masked single-lane stores.
        z = jax.lax.dot_general(
            w3_ref[...], h2.astype(w3_ref.dtype),
            dimension_numbers=(((1,), (1,)), ((), ())),
            preferred_element_type=jnp.float32)
        z = z + b3_ref[0, 0]
        o_ref[...] = jax.nn.sigmoid(z).astype(o_ref.dtype)


def _choose_tile_b(B, tile_b, sublane):
    """Batch tile: big enough to amortize per-step overhead, small enough
    that the grid has >=2 tiles (v7x megacore), multiple of 128 when there
    are multiple tiles (unmasked lane-dense stores)."""
    if B <= 128:
        return _round_up(max(B, sublane), sublane)  # single full-batch tile
    tile_b = _round_up(min(tile_b, B), 128)
    if _cdiv(B, tile_b) < 2:
        tile_b = _round_up(_cdiv(B, 2), 128)
    return tile_b


def ann_forward(x, params, *, tile_b=512, compute_dtype=jnp.float32):
    """x: (B, input_size) -> (B, 1) float32."""
    w1, b1, w2, b2, w3, b3 = params
    B, F = x.shape

    x_itemsize = jnp.dtype(x.dtype).itemsize
    w_itemsize = jnp.dtype(compute_dtype).itemsize
    sublane = 16 if x_itemsize == 2 else 8
    tile_b = _choose_tile_b(B, tile_b, sublane)
    num_tiles = _cdiv(B, tile_b)
    b_pad = num_tiles * tile_b  # only the OUTPUT is padded; x is streamed as-is

    # fc1 contraction tiling over input_size.
    if F <= K_TILE_MAX:
        tk, f_pad = F, F
    else:
        tk = K_TILE_MAX
        f_pad = _round_up(F, tk)

    # Weights are tiny one-time constants: cast/pad them in the wrapper.
    w1c = w1.astype(compute_dtype)
    if f_pad != F:
        # TODO(synk): zero-padding x along F costs one extra pass over x when
        # input_size > K_TILE_MAX and ragged; zeros keep the contraction exact.
        x = jnp.pad(x, ((0, 0), (0, f_pad - F)))
        w1c = jnp.pad(w1c, ((0, f_pad - F), (0, 0)))
    k_tiles = f_pad // tk

    w2c = w2.astype(compute_dtype)
    w3r = jnp.reshape(w3, (1, L2_SIZE)).astype(compute_dtype)   # (1, 64) row
    b1f = jnp.reshape(b1, (1, L1_SIZE)).astype(jnp.float32)
    b2f = jnp.reshape(b2, (1, L2_SIZE)).astype(jnp.float32)
    b3s = jnp.reshape(b3, (1, 1)).astype(jnp.float32)           # SMEM scalar

    # Generation-aware VMEM budget (v5e scoped default 16 MiB, v7x physical
    # 64 MiB): request what the tiles need + headroom, capped at 48 MiB.
    vmem_est = (2 * tile_b * tk * x_itemsize            # x tiles (dbl-buffered)
                + 2 * tk * L1_SIZE * w_itemsize         # w1 K-slices
                + 2 * L1_SIZE * L2_SIZE * w_itemsize    # w2
                + tile_b * L1_SIZE * 4                  # fc1 accumulator
                + 2 * tile_b * L1_SIZE * 4              # h1 / cast temporaries
                + 2 * tile_b * 4                        # output rows
                + 4 * (L1_SIZE + 2 * L2_SIZE) * 4)      # biases, w3 row
    vmem_limit = min(max(int(1.5 * vmem_est) + (2 << 20), 16 << 20), 48 << 20)

    n_wparams = F * L1_SIZE + L1_SIZE * L2_SIZE + L2_SIZE
    cost = pl.CostEstimate(
        flops=2 * B * n_wparams,
        transcendentals=B,
        bytes_accessed=(B * F * x_itemsize            # x stream (dominant)
                        + n_wparams * w_itemsize      # weights
                        + (L1_SIZE + L2_SIZE + 1) * 4  # biases
                        + b_pad * 4))                  # output

    const = lambda shape: pl.BlockSpec(shape, lambda i, k: (0, 0))
    kernel = functools.partial(_ann_kernel, compute_dtype=compute_dtype)

    out = pl.pallas_call(
        kernel,
        out_shape=jax.ShapeDtypeStruct((1, b_pad), jnp.float32),
        grid_spec=pltpu.PrefetchScalarGridSpec(
            num_scalar_prefetch=0,
            grid=(num_tiles, k_tiles),
            in_specs=[
                pl.BlockSpec((tile_b, tk), lambda i, k: (i, k)),   # x tile
                pl.BlockSpec((tk, L1_SIZE), lambda i, k: (k, 0)),  # w1 K-slice
                const((1, L1_SIZE)),                               # b1
                const((L1_SIZE, L2_SIZE)),                         # w2
                const((1, L2_SIZE)),                               # b2
                const((1, L2_SIZE)),                               # w3 row
                pl.BlockSpec(memory_space=pltpu.MemorySpace.SMEM),  # b3 scalar
            ],
            out_specs=pl.BlockSpec((1, tile_b), lambda i, k: (0, i)),
            scratch_shapes=[pltpu.VMEM((tile_b, L1_SIZE), jnp.float32)],
        ),
        compiler_params=pltpu.CompilerParams(
            dimension_semantics=("parallel", "arbitrary"),
            vmem_limit_bytes=vmem_limit),
        cost_estimate=cost,
    )(x, w1c, b1f, w2c, b2f, w3r, b3s)

    return out.reshape(b_pad)[:B].reshape(B, 1)


def init_params(key, input_size):
    """Deterministic init matching nn.Linear parameter shapes (stored
    transposed as (in, out) for the kernel)."""
    k1, k2, k3, k4, k5, k6 = jax.random.split(key, 6)

    def lin(kw, kb, fan_in, fan_out):
        bound = 1.0 / jnp.sqrt(jnp.float32(fan_in))
        w = jax.random.uniform(kw, (fan_in, fan_out), jnp.float32, -bound, bound)
        b = jax.random.uniform(kb, (1, fan_out), jnp.float32, -bound, bound)
        return w, b

    w1, b1 = lin(k1, k2, input_size, L1_SIZE)
    w2, b2 = lin(k3, k4, L1_SIZE, L2_SIZE)
    w3, b3 = lin(k5, k6, L2_SIZE, 1)
    return (w1, b1, w2, b2, w3, b3)


def reference_forward(x, params):
    # Highest precision so the f32 reference is not silently bf16 on the MXU.
    w1, b1, w2, b2, w3, b3 = params
    dot = lambda a, b: jnp.dot(a, b, precision=jax.lax.Precision.HIGHEST)
    h = jax.nn.relu(dot(x, w1) + b1)
    h = jax.nn.relu(dot(h, w2) + b2)
    return jax.nn.sigmoid(dot(h, w3) + b3)


if __name__ == "__main__":
    key = jax.random.PRNGKey(0)
    k_x, k_x2, k_x3, k_p, k_p3 = jax.random.split(key, 5)

    input_size = 32
    params = init_params(k_p, input_size)

    # Small batch -> single full-batch tile (no wrapper padding of x).
    x = jax.random.normal(k_x, (8, input_size), dtype=jnp.float32)
    out = jax.block_until_ready(ann_forward(x, params))
    ref = reference_forward(x, params)
    assert out.shape == (8, 1)
    # Tolerance covers possible bf16-pass MXU f32 matmuls; real bugs are >>1e-1.
    assert jnp.allclose(out, ref, atol=2e-3, rtol=0.0)

    # Ragged multi-tile batch: exercises the partial trailing block and a
    # >=2-tile "parallel" grid (keeps both v7x TensorCores busy).
    x2 = jax.random.normal(k_x2, (300, input_size), dtype=jnp.float32)
    out2 = jax.block_until_ready(ann_forward(x2, params))
    ref2 = reference_forward(x2, params)
    assert out2.shape == (300, 1)
    assert jnp.allclose(out2, ref2, atol=2e-3, rtol=0.0)

    # bf16 weight/MXU path (f32 accumulate + f32 epilogue); x stays f32 in HBM
    # and is cast per-tile in-kernel, so no extra wrapper pass over x.
    out_bf16 = jax.block_until_ready(
        ann_forward(x2, params, compute_dtype=jnp.bfloat16))
    assert out_bf16.shape == (300, 1)
    assert jnp.allclose(out_bf16, ref2, atol=5e-2, rtol=0.0)

    # Large input_size -> K-grid axis over the fc1 contraction (ragged F is
    # zero-padded up to the 1024-wide K tile; x3 itself is small here).
    input_size3 = 1536
    params3 = init_params(k_p3, input_size3)
    x3 = jax.random.normal(k_x3, (32, input_size3), dtype=jnp.float32)
    out3 = jax.block_until_ready(ann_forward(x3, params3))
    ref3 = reference_forward(x3, params3)
    assert out3.shape == (32, 1)
    assert jnp.allclose(out3, ref3, atol=5e-3, rtol=0.0)

    print("KERNEL_OK")
</pallas_src>

<mosaic_0001>
module attributes {stable_mosaic.version = 11 : i64} {
  func.func @_ann_kernel(%arg0: i32, %arg1: i32, %arg2: memref<8x32xf32, #tpu.memory_space<vmem>>, %arg3: memref<32x256xf32, #tpu.memory_space<vmem>>, %arg4: memref<1x256xf32, #tpu.memory_space<vmem>>, %arg5: memref<256x64xf32, #tpu.memory_space<vmem>>, %arg6: memref<1x64xf32, #tpu.memory_space<vmem>>, %arg7: memref<1x64xf32, #tpu.memory_space<vmem>>, %arg8: memref<1x1xf32, #tpu.memory_space<smem>>, %arg9: memref<1x8xf32, #tpu.memory_space<vmem>>, %arg10: memref<8x256xf32, #tpu.memory_space<vmem>>) attributes {dimension_semantics = [#tpu.dimension_semantics<parallel>, #tpu.dimension_semantics<arbitrary>], iteration_bounds = array<i64: 1, 1>, scalar_prefetch = 0 : i64, scratch_operands = 1 : i64, tpu.core_type = #tpu.core_type<tc>, window_params = [{transform_indices = @transform_0, window_bounds = array<i64: 8, 32>}, {transform_indices = @transform_1, window_bounds = array<i64: 32, 256>}, {pipeline_mode = #tpu.pipeline_mode<synchronous>, transform_indices = @transform_2, window_bounds = array<i64: 1, 256>}, {pipeline_mode = #tpu.pipeline_mode<synchronous>, transform_indices = @transform_3, window_bounds = array<i64: 256, 64>}, {pipeline_mode = #tpu.pipeline_mode<synchronous>, transform_indices = @transform_4, window_bounds = array<i64: 1, 64>}, {pipeline_mode = #tpu.pipeline_mode<synchronous>, transform_indices = @transform_5, window_bounds = array<i64: 1, 64>}, {transform_indices = @transform_6, window_bounds = array<i64: 1, 1>}, {transform_indices = @transform_7, window_bounds = array<i64: 1, 8>}]} {
    %c0_i32 = arith.constant 0 : i32
    %0 = arith.cmpi eq, %arg1, %c0_i32 : i32
    %1 = arith.extui %0 : i1 to i32
    %c0_i32_0 = arith.constant 0 : i32
    %2 = arith.cmpi ne, %1, %c0_i32_0 : i32
    scf.if %2 {
      %cst_10 = arith.constant 0.000000e+00 : f32
      %12 = vector.broadcast %cst_10 : f32 to vector<8x256xf32>
      %c0_11 = arith.constant 0 : index
      %c0_12 = arith.constant 0 : index
      %13 = vector.load %arg10[%c0_11, %c0_12] : memref<8x256xf32, #tpu.memory_space<vmem>>, vector<8x256xf32>
      tpu.vector_store %arg10[%c0_11, %c0_12], %12 {strides = array<i32>} : memref<8x256xf32, #tpu.memory_space<vmem>>, vector<8x256xf32>,
    } else {
    }
    %c0 = arith.constant 0 : index
    %c0_1 = arith.constant 0 : index
    %3 = vector.load %arg10[%c0, %c0_1] : memref<8x256xf32, #tpu.memory_space<vmem>>, vector<8x256xf32>
    %c0_2 = arith.constant 0 : index
    %c0_3 = arith.constant 0 : index
    %4 = vector.load %arg2[%c0_2, %c0_3] : memref<8x32xf32, #tpu.memory_space<vmem>>, vector<8x32xf32>
    %c0_4 = arith.constant 0 : index
    %c0_5 = arith.constant 0 : index
    %5 = vector.load %arg3[%c0_4, %c0_5] : memref<32x256xf32, #tpu.memory_space<vmem>>, vector<32x256xf32>
    %cst = arith.constant dense<0.000000e+00> : vector<8x256xf32>
    %6 = tpu.matmul %4, %5, %cst {dimension_numbers = #tpu.dot_dimension_numbers<[1], [0], [0], [1], [0, 0, 1, 1], [], []>} : vector<8x32xf32>, vector<32x256xf32>, vector<8x256xf32> -> vector<8x256xf32>
    %7 = arith.addf %3, %6 : vector<8x256xf32>
    %c0_6 = arith.constant 0 : index
    %c0_7 = arith.constant 0 : index
    %8 = vector.load %arg10[%c0_6, %c0_7] : memref<8x256xf32, #tpu.memory_space<vmem>>, vector<8x256xf32>
    tpu.vector_store %arg10[%c0_6, %c0_7], %7 {strides = array<i32>} : memref<8x256xf32, #tpu.memory_space<vmem>>, vector<8x256xf32>,
    %c0_i32_8 = arith.constant 0 : i32
    %9 = arith.cmpi eq, %arg1, %c0_i32_8 : i32
    %10 = arith.extui %9 : i1 to i32
    %c0_i32_9 = arith.constant 0 : i32
    %11 = arith.cmpi ne, %10, %c0_i32_9 : i32
    scf.if %11 {
      %c0_10 = arith.constant 0 : index
      %c0_11 = arith.constant 0 : index
      %12 = vector.load %arg10[%c0_10, %c0_11] : memref<8x256xf32, #tpu.memory_space<vmem>>, vector<8x256xf32>
      %c0_12 = arith.constant 0 : index
      %c0_13 = arith.constant 0 : index
      %13 = vector.load %arg4[%c0_12, %c0_13] : memref<1x256xf32, #tpu.memory_space<vmem>>, vector<1x256xf32>
      %14 = vector.broadcast %13 : vector<1x256xf32> to vector<8x256xf32>
      %15 = arith.addf %12, %14 : vector<8x256xf32>
      %cst_14 = arith.constant 0.000000e+00 : f32
      %16 = vector.broadcast %cst_14 : f32 to vector<8x256xf32>
      %17 = arith.maximumf %15, %16 : vector<8x256xf32>
      %c0_15 = arith.constant 0 : index
      %c0_16 = arith.constant 0 : index
      %18 = vector.load %arg5[%c0_15, %c0_16] : memref<256x64xf32, #tpu.memory_space<vmem>>, vector<256x64xf32>
      %cst_17 = arith.constant dense<0.000000e+00> : vector<8x64xf32>
      %19 = tpu.matmul %17, %18, %cst_17 {dimension_numbers = #tpu.dot_dimension_numbers<[1], [0], [0], [1], [0, 0, 1, 1], [], []>} : vector<8x256xf32>, vector<256x64xf32>, vector<8x64xf32> -> vector<8x64xf32>
      %c0_18 = arith.constant 0 : index
      %c0_19 = arith.constant 0 : index
      %20 = vector.load %arg6[%c0_18, %c0_19] : memref<1x64xf32, #tpu.memory_space<vmem>>, vector<1x64xf32>
      %21 = vector.broadcast %20 : vector<1x64xf32> to vector<8x64xf32>
      %22 = arith.addf %19, %21 : vector<8x64xf32>
      %cst_20 = arith.constant 0.000000e+00 : f32
      %23 = vector.broadcast %cst_20 : f32 to vector<8x64xf32>
      %24 = arith.maximumf %22, %23 : vector<8x64xf32>
      %c0_21 = arith.constant 0 : index
      %c0_22 = arith.constant 0 : index
      %25 = vector.load %arg7[%c0_21, %c0_22] : memref<1x64xf32, #tpu.memory_space<vmem>>, vector<1x64xf32>
      %cst_23 = arith.constant dense<0.000000e+00> : vector<1x8xf32>
      %26 = tpu.matmul %25, %24, %cst_23 {dimension_numbers = #tpu.dot_dimension_numbers<[1], [1], [0], [0], [0, 0, 1, 0], [], []>} : vector<1x64xf32>, vector<8x64xf32>, vector<1x8xf32> -> vector<1x8xf32>
      %c0_24 = arith.constant 0 : index
      %c0_25 = arith.constant 0 : index
      %27 = memref.load %arg8[%c0_24, %c0_25] : memref<1x1xf32, #tpu.memory_space<smem>>
      %28 = vector.broadcast %27 : f32 to vector<1x8xf32>
      %29 = arith.addf %26, %28 : vector<1x8xf32>
      %30 = arith.negf %29 : vector<1x8xf32>
      %31 = math.exp %30 : vector<1x8xf32>
      %cst_26 = arith.constant 1.000000e+00 : f32
      %32 = vector.broadcast %cst_26 : f32 to vector<1x8xf32>
      %33 = arith.addf %32, %31 : vector<1x8xf32>
      %34 = arith.divf %32, %33 : vector<1x8xf32>
      %c0_27 = arith.constant 0 : index
      %c0_28 = arith.constant 0 : index
      %35 = vector.load %arg9[%c0_27, %c0_28] : memref<1x8xf32, #tpu.memory_space<vmem>>, vector<1x8xf32>
      tpu.vector_store %arg9[%c0_27, %c0_28], %34 {strides = array<i32>} : memref<1x8xf32, #tpu.memory_space<vmem>>, vector<1x8xf32>,
    } else {
    }
    return
  }
  func.func @transform_0(%arg0: i32, %arg1: i32) -> (i32, i32) {
    %c0_i32 = arith.constant 0 : i32
    return %arg0, %arg1 : i32, i32
  }
  func.func @transform_1(%arg0: i32, %arg1: i32) -> (i32, i32) {
    %c0_i32 = arith.constant 0 : i32
    %c0_i32_0 = arith.constant 0 : i32
    return %arg1, %c0_i32 : i32, i32
  }
  func.func @transform_2(%arg0: i32, %arg1: i32) -> (i32, i32) {
    %c0_i32 = arith.constant 0 : i32
    %c0_i32_0 = arith.constant 0 : i32
    %c0_i32_1 = arith.constant 0 : i32
    return %c0_i32, %c0_i32_0 : i32, i32
  }
  func.func @transform_3(%arg0: i32, %arg1: i32) -> (i32, i32) {
    %c0_i32 = arith.constant 0 : i32
    %c0_i32_0 = arith.constant 0 : i32
    %c0_i32_1 = arith.constant 0 : i32
    return %c0_i32, %c0_i32_0 : i32, i32
  }
  func.func @transform_4(%arg0: i32, %arg1: i32) -> (i32, i32) {
    %c0_i32 = arith.constant 0 : i32
    %c0_i32_0 = arith.constant 0 : i32
    %c0_i32_1 = arith.constant 0 : i32
    return %c0_i32, %c0_i32_0 : i32, i32
  }
  func.func @transform_5(%arg0: i32, %arg1: i32) -> (i32, i32) {
    %c0_i32 = arith.constant 0 : i32
    %c0_i32_0 = arith.constant 0 : i32
    %c0_i32_1 = arith.constant 0 : i32
    return %c0_i32, %c0_i32_0 : i32, i32
  }
  func.func @transform_6(%arg0: i32, %arg1: i32) -> (i32, i32) {
    %c0_i32 = arith.constant 0 : i32
    %c0_i32_0 = arith.constant 0 : i32
    %c0_i32_1 = arith.constant 0 : i32
    return %c0_i32, %c0_i32_0 : i32, i32
  }
  func.func @transform_7(%arg0: i32, %arg1: i32) -> (i32, i32) {
    %c0_i32 = arith.constant 0 : i32
    %c0_i32_0 = arith.constant 0 : i32
    return %c0_i32, %arg0 : i32, i32
  }
}

</mosaic_0001>

<llo_original>
// kernel: tpu_custom_call.1
$region0: #{tpu_custom_call.1}
  #allocation0 [shape = 'u32[]', space=smem, size = 0x4, offset = 0x4, fixed_abs, tag = 'smem constant byte address 0x4 - core index']
  #allocation1 [shape = 'u32[144,128]{1,0:T(1,128)}', space=vmem, size = 0x12000, scoped, tag = 'internal scratch']
  #allocation2 [shape = 'f32[8,256]{1,0:T(8,128)}', space=vmem, size = 0x2000, scoped, tag = 'scratch operand']
  #allocation3 [shape = 'f32[1,1]{1,0:T(1,128)S(6)}', space=smem, size = 0x200, scoped, tag = 'scoped memory for tpu_custom_call.1']
  %s0 = inlined_call_operand.vmem [shape: f32[8,32], index: 0, kind: input, shape index: {}]
  %s1 = inlined_call_operand.vmem [shape: f32[32,256], index: 1, kind: input, shape index: {}]
  %s2 = inlined_call_operand.vmem [shape: f32[1,256], index: 2, kind: input, shape index: {}]
  %s3 = inlined_call_operand.vmem [shape: f32[256,64], index: 3, kind: input, shape index: {}]
  %s4 = inlined_call_operand.vmem [shape: f32[1,64], index: 4, kind: input, shape index: {}]
  %s5 = inlined_call_operand.vmem [shape: f32[1,64], index: 5, kind: input, shape index: {}]
  %s6 = inlined_call_operand.<no memory space> [shape: f32[1,1], index: 6, kind: input, shape index: {}]
  %s7 = inlined_call_operand.hbm [shape: f32[1,8], index: 7, kind: output, shape index: {}]
  %s8 = sld [smem:[#allocation0]]
  $region46: #{tpu_custom_call.1} parent=0
    _
  %s10 = ssub.s32 1, %s8
  %s11 = scalar_select 0, %s10, %s8
  %12 = sst [smem:[#allocation3]] %s6
  $region1: #{tpu_custom_call.1} parent=0
    #allocation4 [shape = 'u8[512]{0}', space=vmem, size = 0x400, scoped, tag = 'output window, operand 0, single buffered']
    #allocation5 [shape = 's32[1]{0}', space=sflag, size = 0x4, scoped, tag = 'scoped memory for tpu_custom_call.1']
    %13 = vsyncpa [#allocation5], 0
    // Predicated region
    $region2: #{tpu_custom_call.1} parent=1 // pred_check
      _
    $region3: #{tpu_custom_call.1} parent=1 // pred_check_branch
      %15 = sbr.rel (0) target = $region5
    $region4: #{tpu_custom_call.1} parent=1 // pred_region
      _
    $region5: #{tpu_custom_call.1} parent=1 // pred_fallthru
      _
    // Predicated region
    $region6: #{tpu_custom_call.1} parent=1 // pred_check
      _
    $region7: #{tpu_custom_call.1} parent=1 // pred_check_branch
      %17 = sbr.rel (0) target = $region9
    $region8: #{tpu_custom_call.1} parent=1 // pred_region
      _
    $region9: #{tpu_custom_call.1} parent=1 // pred_fallthru
      _
    // Predicated region
    $region10: #{tpu_custom_call.1} parent=1 // pred_check
      _
    $region11: #{tpu_custom_call.1} parent=1 // pred_check_branch
      %19 = sbr.rel (0) target = $region13
    $region12: #{tpu_custom_call.1} parent=1 // pred_region
      _
    $region13: #{tpu_custom_call.1} parent=1 // pred_fallthru
      _
    // Predicated region
    $region14: #{tpu_custom_call.1} parent=1 // pred_check
      _
    $region15: #{tpu_custom_call.1} parent=1 // pred_check_branch
      %21 = sbr.rel (0) target = $region17
    $region16: #{tpu_custom_call.1} parent=1 // pred_region
      _
    $region17: #{tpu_custom_call.1} parent=1 // pred_fallthru
      _
    // Predicated region
    $region18: #{tpu_custom_call.1} parent=1 // pred_check
      _
    $region19: #{tpu_custom_call.1} parent=1 // pred_check_branch
      %23 = sbr.rel (0) target = $region21
    $region20: #{tpu_custom_call.1} parent=1 // pred_region
      _
    $region21: #{tpu_custom_call.1} parent=1 // pred_fallthru
      _
    // Predicated region
    $region22: #{tpu_custom_call.1} parent=1 // pred_check
      _
    $region23: #{tpu_custom_call.1} parent=1 // pred_check_branch
      %25 = sbr.rel (0) target = $region25
    $region24: #{tpu_custom_call.1} parent=1 // pred_region
      _
    $region25: #{tpu_custom_call.1} parent=1 // pred_fallthru
      _
    // Predicated region
    $region26: #{tpu_custom_call.1} parent=1 // pred_check
      _
    $region27: #{tpu_custom_call.1} parent=1 // pred_check_branch
      %27 = sbr.rel (0) target = $region29
    $region28: #{tpu_custom_call.1} parent=1 // pred_region
      _
    $region29: #{tpu_custom_call.1} parent=1 // pred_fallthru
      _
    %p28 = scmp.eq.s32.totalorder 0, 0
    // Predicated region
    $region30: #{tpu_custom_call.1} parent=1 // pred_check
      %p29 = pneg %p28
    $region31: #{tpu_custom_call.1} parent=1 // pred_check_branch
      %31 = sbr.rel (%p29) target = $region33
    $region32: #{tpu_custom_call.1} parent=1 // pred_region
      %32 = vst [vmem:[#allocation2] sm:$0xff] 0.0
      %33 = vst [vmem:[#allocation2 + $0x8] sm:$0xff] 0.0
    $region33: #{tpu_custom_call.1} parent=1 // pred_fallthru
      _
    %v34 = vld [vmem:[#allocation2] sm:$0xff]
    %v35 = vld [vmem:[#allocation2 + $0x8] sm:$0xff]
    %v36 = vld [vmem:[%s0] sm:$0xff]
    %v37 = vld [vmem:[%s1] sm:$0xff]
    %v38 = vld [vmem:[%s1 + $0x8] sm:$0xff]
    %v39 = vld [vmem:[%s1 + $0x10] sm:$0xff]
    %v40 = vld [vmem:[%s1 + $0x18] sm:$0xff]
    %v41 = vld [vmem:[%s1 + $0x20] sm:$0xff]
    %v42 = vld [vmem:[%s1 + $0x28] sm:$0xff]
    %v43 = vld [vmem:[%s1 + $0x30] sm:$0xff]
    %v44 = vld [vmem:[%s1 + $0x38] sm:$0xff]
    %vm45 = vcmask 261120
    %v47 = vsel %vm45, %v36, 0
    %49 = vmatprep.subr.mxu0 %v38
    %50 = vmatpush1.msra.mxu0 %v37
    %51 = vmatprep.subr.mxu0 %v40
    %52 = vmatpush1.msra.mxu0 %v39
    %53 = vmatprep.subr.mxu0 %v42
    %54 = vmatpush1.msra.mxu0 %v41
    %55 = vmatprep.subr.mxu0 %v44
    %56 = vmatpush1.msra.mxu0 %v43
    %57 = vmatprep.subr.mxu0 0.0
    %58 = vmatpush1.msra.mxu0 0.0
    %59 = vmatprep.subr.mxu0 0.0
    %60 = vmatpush1.msra.mxu0 0.0
    %61 = vmatprep.subr.mxu0 0.0
    %62 = vmatpush1.msra.mxu0 0.0
    %63 = vmatprep.subr.mxu0 0.0
    %64 = vmatpush1.msra.mxu0 0.0
    %65 = vmatprep.subr.mxu0 0.0
    %66 = vmatpush1.msra.mxu0 0.0
    %67 = vmatprep.subr.mxu0 0.0
    %68 = vmatpush1.msra.mxu0 0.0
    %69 = vmatprep.subr.mxu0 0.0
    %70 = vmatpush1.msra.mxu0 0.0
    %71 = vmatprep.subr.mxu0 0.0
    %72 = vmatpush1.msra.mxu0 0.0
    %73 = vmatprep.subr.mxu0 0.0
    %74 = vmatpush1.msra.mxu0 0.0
    %75 = vmatprep.subr.mxu0 0.0
    %76 = vmatpush1.msra.mxu0 0.0
    %77 = vmatprep.subr.mxu0 0.0
    %78 = vmatpush1.msra.mxu0 0.0
    %79 = vmatprep.subr.mxu0 0.0
    %80 = vmatpush1.msra.mxu0 0.0
    %81 = vmatprep.subr.mxu0 0.0
    %82 = vmatpush1.msra.mxu0 0.0
    %83 = vmatprep.subr.mxu0 0.0
    %84 = vmatpush1.msra.mxu0 0.0
    %85 = vmatprep.subr.mxu0 0.0
    %86 = vmatpush1.msra.mxu0 0.0
    %87 = vmatprep.subr.mxu0 0.0
    %88 = vmatpush1.msra.mxu0 0.0
    %89 = vmatprep.subr.mxu0 0.0
    %90 = vmatpush1.msra.mxu0 0.0
    %91 = vmatprep.subr.mxu0 0.0
    %92 = vmatpush1.msra.mxu0 0.0
    %93 = vmatprep.subr.mxu0 0.0
    %94 = vmatpush1.msra.mxu0 0.0
    %95 = vmatprep.subr.mxu0 0.0
    %96 = vmatpush1.msra.mxu0 0.0
    %97 = vmatprep.subr.mxu0 0.0
    %98 = vmatpush1.msra.mxu0 0.0
    %99 = vmatprep.subr.mxu0 0.0
    %100 = vmatpush1.msra.mxu0 0.0
    %101 = vmatprep.subr.mxu0 0.0
    %102 = vmatpush1.msra.mxu0 0.0
    %103 = vmatprep.subr.mxu0 0.0
    %104 = vmatpush1.msra.mxu0 0.0
    %105 = vmatprep.subr.mxu0 0.0
    %106 = vmatpush1.msra.mxu0 0.0
    %107 = vmatprep.subr.mxu0 0.0
    %108 = vmatpush1.msra.mxu0 0.0
    %109 = vmatprep.subr.mxu0 0.0
    %110 = vmatpush1.msra.mxu0 0.0
    %111 = vmatprep.subr.mxu0 0.0
    %112 = vmatpush1.msra.mxu0 0.0
    %113 = vmatprep.mubr.f32.mxu0 0.0
    %114 = vmatmul.mubr.f32.gmra.mrb[0].mxu0 %v47
    %v115 = vpop.f32.mrb[0].mxu0
    %v116 = vadd.f32 0.0, %v115
    %v117 = vpop.f32.mrb[0].mxu0
    %v118 = vadd.f32 0.0, %v117
    %119 = vdwg.mxu0
    %v120 = vadd.f32 %v34, %v116
    %v121 = vadd.f32 %v35, %v118
    %122 = vst [vmem:[#allocation2] sm:$0xff] %v120
    %123 = vst [vmem:[#allocation2 + $0x8] sm:$0xff] %v121
    // Predicated region
    $region34: #{tpu_custom_call.1} parent=1 // pred_check
      %p124 = pneg %p28
    $region35: #{tpu_custom_call.1} parent=1 // pred_check_branch
      %126 = sbr.rel (%p124) target = $region37
    $region36: #{tpu_custom_call.1} parent=1 // pred_region
      %v127 = vld [vmem:[#allocation2] sm:$0xff]
      %v128 = vld [vmem:[#allocation2 + $0x8] sm:$0xff]
      %v129 = vld [vmem:[%s2] sm:$0x3]
      %v131 = vlaneseq
      %v132 = vshrl.u32 %v131, 7
      %v133 = vsub.s32 0, %v132
      %v134 = vrot.slane %v129, %v133
      %v135 = vlaneseq
      %v136 = vshrl.u32 %v135, 7
      %v137 = vsub.s32 1, %v136
      %v138 = vrot.slane %v129, %v137
      %v141 = vadd.f32 %v127, %v134
      %v142 = vadd.f32 %v128, %v138
      %v143 = vmax.f32 %v141, 0.0
      %v144 = vmax.f32 %v142, 0.0
      %v145 = vld [vmem:[%s3] sm:$0xff]
      %v146 = vld [vmem:[%s3 + $0x8] sm:$0xff]
      %v147 = vld [vmem:[%s3 + $0x10] sm:$0xff]
      %v148 = vld [vmem:[%s3 + $0x18] sm:$0xff]
      %v149 = vld [vmem:[%s3 + $0x20] sm:$0xff]
      %v150 = vld [vmem:[%s3 + $0x28] sm:$0xff]
      %v151 = vld [vmem:[%s3 + $0x30] sm:$0xff]
      %v152 = vld [vmem:[%s3 + $0x38] sm:$0xff]
      %v153 = vld [vmem:[%s3 + $0x40] sm:$0xff]
      %v154 = vld [vmem:[%s3 + $0x48] sm:$0xff]
      %v155 = vld [vmem:[%s3 + $0x50] sm:$0xff]
      %v156 = vld [vmem:[%s3 + $0x58] sm:$0xff]
      %v157 = vld [vmem:[%s3 + $0x60] sm:$0xff]
      %v158 = vld [vmem:[%s3 + $0x68] sm:$0xff]
      %v159 = vld [vmem:[%s3 + $0x70] sm:$0xff]
      %v160 = vld [vmem:[%s3 + $0x78] sm:$0xff]
      %v161 = vld [vmem:[%s3 + $0x80] sm:$0xff]
      %v162 = vld [vmem:[%s3 + $0x88] sm:$0xff]
      %v163 = vld [vmem:[%s3 + $0x90] sm:$0xff]
      %v164 = vld [vmem:[%s3 + $0x98] sm:$0xff]
      %v165 = vld [vmem:[%s3 + $0xa0] sm:$0xff]
      %v166 = vld [vmem:[%s3 + $0xa8] sm:$0xff]
      %v167 = vld [vmem:[%s3 + $0xb0] sm:$0xff]
      %v168 = vld [vmem:[%s3 + $0xb8] sm:$0xff]
      %v169 = vld [vmem:[%s3 + $0xc0] sm:$0xff]
      %v170 = vld [vmem:[%s3 + $0xc8] sm:$0xff]
      %v171 = vld [vmem:[%s3 + $0xd0] sm:$0xff]
      %v172 = vld [vmem:[%s3 + $0xd8] sm:$0xff]
      %v173 = vld [vmem:[%s3 + $0xe0] sm:$0xff]
      %v174 = vld [vmem:[%s3 + $0xe8] sm:$0xff]
      %v175 = vld [vmem:[%s3 + $0xf0] sm:$0xff]
      %v176 = vld [vmem:[%s3 + $0xf8] sm:$0xff]
      %v177 = vld [vmem:[%s4] sm:$0x1]
      %v179 = vlaneseq
      %v180 = vshrl.u32 %v179, 7
      %v181 = vsub.s32 0, %v180
      %v182 = vrot.slane %v177, %v181
      %184 = vmatprep.subr.mxu0 0.0
      %185 = vmatpush1.msra.mxu0 %v145
      %186 = vmatprep.subr.mxu0 0.0
      %187 = vmatpush1.msra.mxu0 %v146
      %188 = vmatprep.subr.mxu0 0.0
      %189 = vmatpush1.msra.mxu0 %v147
      %190 = vmatprep.subr.mxu0 0.0
      %191 = vmatpush1.msra.mxu0 %v148
      %192 = vmatprep.subr.mxu0 0.0
      %193 = vmatpush1.msra.mxu0 %v149
      %194 = vmatprep.subr.mxu0 0.0
      %195 = vmatpush1.msra.mxu0 %v150
      %196 = vmatprep.subr.mxu0 0.0
      %197 = vmatpush1.msra.mxu0 %v151
      %198 = vmatprep.subr.mxu0 0.0
      %199 = vmatpush1.msra.mxu0 %v152
      %200 = vmatprep.subr.mxu0 0.0
      %201 = vmatpush1.msra.mxu0 %v153
      %202 = vmatprep.subr.mxu0 0.0
      %203 = vmatpush1.msra.mxu0 %v154
      %204 = vmatprep.subr.mxu0 0.0
      %205 = vmatpush1.msra.mxu0 %v155
      %206 = vmatprep.subr.mxu0 0.0
      %207 = vmatpush1.msra.mxu0 %v156
      %208 = vmatprep.subr.mxu0 0.0
      %209 = vmatpush1.msra.mxu0 %v157
      %210 = vmatprep.subr.mxu0 0.0
      %211 = vmatpush1.msra.mxu0 %v158
      %212 = vmatprep.subr.mxu0 0.0
      %213 = vmatpush1.msra.mxu0 %v159
      %214 = vmatprep.subr.mxu0 0.0
      %215 = vmatpush1.msra.mxu0 %v160
      %216 = vmatprep.subr.mxu0 0.0
      %217 = vmatpush1.msra.mxu0 %v161
      %218 = vmatprep.subr.mxu0 0.0
      %219 = vmatpush1.msra.mxu0 %v162
      %220 = vmatprep.subr.mxu0 0.0
      %221 = vmatpush1.msra.mxu0 %v163
      %222 = vmatprep.subr.mxu0 0.0
      %223 = vmatpush1.msra.mxu0 %v164
      %224 = vmatprep.subr.mxu0 0.0
      %225 = vmatpush1.msra.mxu0 %v165
      %226 = vmatprep.subr.mxu0 0.0
      %227 = vmatpush1.msra.mxu0 %v166
      %228 = vmatprep.subr.mxu0 0.0
      %229 = vmatpush1.msra.mxu0 %v167
      %230 = vmatprep.subr.mxu0 0.0
      %231 = vmatpush1.msra.mxu0 %v168
      %232 = vmatprep.subr.mxu0 0.0
      %233 = vmatpush1.msra.mxu0 %v169
      %234 = vmatprep.subr.mxu0 0.0
      %235 = vmatpush1.msra.mxu0 %v170
      %236 = vmatprep.subr.mxu0 0.0
      %237 = vmatpush1.msra.mxu0 %v171
      %238 = vmatprep.subr.mxu0 0.0
      %239 = vmatpush1.msra.mxu0 %v172
      %240 = vmatprep.subr.mxu0 0.0
      %241 = vmatpush1.msra.mxu0 %v173
      %242 = vmatprep.subr.mxu0 0.0
      %243 = vmatpush1.msra.mxu0 %v174
      %244 = vmatprep.subr.mxu0 0.0
      %245 = vmatpush1.msra.mxu0 %v175
      %246 = vmatprep.subr.mxu0 0.0
      %247 = vmatpush1.msra.mxu0 %v176
      %248 = vmatprep.mubr.f32.mxu0 %v144
      %249 = vmatmul.mubr.f32.gmra.mrb[0].mxu0 %v143
      %v250 = vpop.f32.mrb[0].mxu0
      %v251 = vadd.f32 %v182, %v250
      %v252 = vpop.f32.mrb[0].mxu0
      %253 = vdwg.mxu0
      %v254 = vmax.f32 %v251, 0.0
      %v255 = vld [vmem:[%s5] sm:$0x1]
      %s256 = sld [smem:[#allocation3]]
      %v257 = vstv %s256
      %vm258 = vcmask 523264
      %v260 = vsel %vm258, %v255, 0
      %v263 = vsel %vm258, %v254, 0
      %265 = vmatprep.subr.mxu0 0.0
      %266 = vmatpush1.xpose.msra.mxu0 %v263
      %267 = vmatprep.subr.mxu0 0.0
      %268 = vmatpush1.xpose.msra.mxu0 0.0
      %269 = vmatprep.subr.mxu0 0.0
      %270 = vmatpush1.xpose.msra.mxu0 0.0
      %271 = vmatprep.subr.mxu0 0.0
      %272 = vmatpush1.xpose.msra.mxu0 0.0
      %273 = vmatprep.subr.mxu0 0.0
      %274 = vmatpush1.xpose.msra.mxu0 0.0
      %275 = vmatprep.subr.mxu0 0.0
      %276 = vmatpush1.xpose.msra.mxu0 0.0
      %277 = vmatprep.subr.mxu0 0.0
      %278 = vmatpush1.xpose.msra.mxu0 0.0
      %279 = vmatprep.subr.mxu0 0.0
      %280 = vmatpush1.xpose.msra.mxu0 0.0
      %281 = vmatprep.subr.mxu0 0.0
      %282 = vmatpush1.xpose.msra.mxu0 0.0
      %283 = vmatprep.subr.mxu0 0.0
      %284 = vmatpush1.xpose.msra.mxu0 0.0
      %285 = vmatprep.subr.mxu0 0.0
      %286 = vmatpush1.xpose.msra.mxu0 0.0
      %287 = vmatprep.subr.mxu0 0.0
      %288 = vmatpush1.xpose.msra.mxu0 0.0
      %289 = vmatprep.subr.mxu0 0.0
      %290 = vmatpush1.xpose.msra.mxu0 0.0
      %291 = vmatprep.subr.mxu0 0.0
      %292 = vmatpush1.xpose.msra.mxu0 0.0
      %293 = vmatprep.subr.mxu0 0.0
      %294 = vmatpush1.xpose.msra.mxu0 0.0
      %295 = vmatprep.subr.mxu0 0.0
      %296 = vmatpush1.xpose.msra.mxu0 0.0
      %297 = vmatprep.subr.mxu0 0.0
      %298 = vmatpush1.xpose.msra.mxu0 0.0
      %299 = vmatprep.subr.mxu0 0.0
      %300 = vmatpush1.xpose.msra.mxu0 0.0
      %301 = vmatprep.subr.mxu0 0.0
      %302 = vmatpush1.xpose.msra.mxu0 0.0
      %303 = vmatprep.subr.mxu0 0.0
      %304 = vmatpush1.xpose.msra.mxu0 0.0
      %305 = vmatprep.subr.mxu0 0.0
      %306 = vmatpush1.xpose.msra.mxu0 0.0
      %307 = vmatprep.subr.mxu0 0.0
      %308 = vmatpush1.xpose.msra.mxu0 0.0
      %309 = vmatprep.subr.mxu0 0.0
      %310 = vmatpush1.xpose.msra.mxu0 0.0
      %311 = vmatprep.subr.mxu0 0.0
      %312 = vmatpush1.xpose.msra.mxu0 0.0
      %313 = vmatprep.subr.mxu0 0.0
      %314 = vmatpush1.xpose.msra.mxu0 0.0
      %315 = vmatprep.subr.mxu0 0.0
      %316 = vmatpush1.xpose.msra.mxu0 0.0
      %317 = vmatprep.subr.mxu0 0.0
      %318 = vmatpush1.xpose.msra.mxu0 0.0
      %319 = vmatprep.subr.mxu0 0.0
      %320 = vmatpush1.xpose.msra.mxu0 0.0
      %321 = vmatprep.subr.mxu0 0.0
      %322 = vmatpush1.xpose.msra.mxu0 0.0
      %323 = vmatprep.subr.mxu0 0.0
      %324 = vmatpush1.xpose.msra.mxu0 0.0
      %325 = vmatprep.subr.mxu0 0.0
      %326 = vmatpush1.xpose.msra.mxu0 0.0
      %327 = vmatprep.subr.mxu0 0.0
      %328 = vmatpush1.xpose.msra.mxu0 0.0
      %329 = vmatprep.mubr.f32.mxu0 0.0
      %330 = vmatmul.mubr.f32.gmra.mrb[0].mxu0 %v260
      %v331 = vpop.f32.mrb[0].mxu0
      %v332 = vadd.f32 %v257, %v331
      %v333 = vpop.f32.mrb[0].mxu0
      %334 = vdwg.mxu0
      %v335 = vxor.u32 %v332, 2147483648
      %v336 = vmul.f32 %v335, 1.442695
      %v337 = vpow.pop %v336
      %v338 = vadd.f32 %v337, 1.0
      %v339 = vrcp.pop %v338
      %v340 = vmul.f32 1.0, %v339
      %vm341 = vcmask 57344
      %342 = vst.msk [vmem:[#allocation4] sm:$0x1] %vm341, %v340
    $region37: #{tpu_custom_call.1} parent=1 // pred_fallthru
      _
    // Predicated region
    $region38: #{tpu_custom_call.1} parent=1 // pred_check
      _
    $region39: #{tpu_custom_call.1} parent=1 // pred_check_branch
      %344 = sbr.rel (0) target = $region41
    $region40: #{tpu_custom_call.1} parent=1 // pred_region
      %s346 = ssub.s32 16, 16
      %347 = vsyncadd [#allocation5], %s346
      %s349 = sshll.u32 [#allocation4], 4
      %s350 = int_to_ptr.vmem [resolvable:$true] %s349
      %352 = dma.vmem_to_hbm [thread:$0]  %s350, 16, %s7, [#allocation5]
    $region41: #{tpu_custom_call.1} parent=1 // pred_fallthru
      _
    // Predicated region
    $region42: #{tpu_custom_call.1} parent=1 // pred_check
      _
    $region43: #{tpu_custom_call.1} parent=1 // pred_check_branch
      %354 = sbr.rel (0) target = $region45
    $region44: #{tpu_custom_call.1} parent=1 // pred_region
      %355 = dma.done [#allocation5], 16
    $region45: #{tpu_custom_call.1} parent=1 // pred_fallthru
      _
    %356 = vsyncpa [#allocation5], 1

</llo_original>
